<compile_context>
chip_gen: v7x
topology: tpu7x:2x2x1
jax: 0.10.0
libtpu: 0.0.40
codegen_flags: <defaults>
</compile_context>

<pallas_src>
import functools

import jax
import jax.numpy as jnp
from jax import lax
from jax.experimental import pallas as pl
from jax.experimental.pallas import tpu as pltpu

_MINUS_INFTY = -1e30
_LANE = 128
_TARGET_BLOCK_BYTES = 2 * 1024 * 1024  # ~2 MiB blocks: ~85% of HBM roofline, fits every gen


def _cdiv(a, b):
    return -(-a // b)


def _uniform_count_kernel(x_ref, o_ref, acc_ref, *, td, dr, nc,
                          part_dtype, need_col_mask):
    """Accumulate per-(row, lane) counts of elements outside [0, 1] into f32 scratch."""
    s = pl.program_id(0)   # feature-split axis (gives v7x a 2nd parallel block for tiny batches)
    j = pl.program_id(2)   # reduction axis over feature tiles

    @pl.when(j == 0)
    def _init():
        acc_ref[...] = jnp.zeros_like(acc_ref)

    x = x_ref[...]
    # NaN fails both compares -> counted as OUTSIDE, matching torch.where(above_0 & below_1, ...)
    inside = (x >= 0.0) & (x <= 1.0)

    one = jnp.ones((), part_dtype)
    zero = jnp.zeros((), part_dtype)
    if need_col_mask:
        # Ragged last feature tile (or duplicate clamped tile of the split axis):
        # zero the contribution of lanes past the true feature extent.
        col = lax.broadcasted_iota(jnp.int32, (1, td), 1) + (s * nc + j) * td
        ones_row = jnp.where(col < dr, one, zero)      # (1, td)
        contrib = jnp.where(inside, zero, ones_row)    # broadcasts over rows
    else:
        contrib = jnp.where(inside, zero, one)

    if td % _LANE == 0:
        # Lane-dense per-lane partials: sum the td/128 aligned 128-wide lane slices
        # (pure VPU adds, no cross-lane reduce, no relayout). Exact in bf16 (<= 64).
        part = contrib[:, 0:_LANE]
        for t in range(1, td // _LANE):
            part = part + contrib[:, t * _LANE:(t + 1) * _LANE]
        acc_ref[...] += part.astype(jnp.float32)
    else:
        # Only reachable when td == full feature extent (< a lane multiple): a single
        # cross-lane reduce per row block, negligible.
        acc_ref[:, 0:1] += jnp.sum(contrib.astype(jnp.float32), axis=-1, keepdims=True)

    @pl.when(j == nc - 1)
    def _flush():
        o_ref[...] = acc_ref[...]


def uniform_log_prob(x, size):
    """x: array of shape (B, *size). Returns log_px of shape (B,), dtype of x."""
    B = x.shape[0]
    D = 1
    for d in size:
        D *= int(d)
    itemsize = jnp.dtype(x.dtype).itemsize
    sub = max(8, 32 // max(itemsize, 1))   # sublanes per packed row: 8 f32, 16 bf16, 32 int8

    # Sublane fill for tiny batches: view (B, D) as (B*sub, D/sub) so every vreg is
    # fully occupied; partial counts are summed back per original row in the wrapper.
    fold = sub if (B < sub and D % sub == 0) else 1
    R, Dr = B * fold, D // fold
    xr = x.reshape(R, Dr)                  # contiguous metadata reshape, no HBM copy

    # ---- row tile: multiple of the dtype sublane count; >= 2 row blocks when possible
    # so the 'parallel' axis can shard across both v7x TensorCores.
    if R >= 512:
        tb = 256
    elif R > sub:
        tb = max(sub, (min(256, R // 2) // sub) * sub)
    else:
        tb = R                             # tiny: full row extent (allowed by the (8,128) rule)
    nr = _cdiv(R, tb)

    # ---- lane tile: aim for ~2 MiB blocks; prefer an aligned divisor of Dr (no ragged
    # tile, no wrapper-side pad copy), otherwise mask the ragged tile in-kernel.
    td_cap = max(_LANE, min(8192, (_TARGET_BLOCK_BYTES // (tb * itemsize)) // _LANE * _LANE))
    if Dr <= td_cap:
        td = Dr
    else:
        td = 0
        for cand in range(td_cap, _LANE - 1, -_LANE):
            if Dr % cand == 0:
                td = cand
                break
        if td < 512:
            td = td_cap                    # ragged last tile, handled by the lane mask
    nct = _cdiv(Dr, td)

    # ---- optional 2-way feature split so a 'parallel' grid axis has >= 2 blocks (v7x).
    ns = 2 if (nr == 1 and nct >= 2 and tb % 8 == 0) else 1
    nc = _cdiv(nct, ns)
    need_col_mask = (ns * nc * td) != Dr

    part_dtype = jnp.bfloat16 if x.dtype == jnp.bfloat16 else jnp.float32

    kernel = functools.partial(
        _uniform_count_kernel, td=td, dr=Dr, nc=nc,
        part_dtype=part_dtype, need_col_mask=need_col_mask)

    def in_index_map(s, i, j):
        # Clamp duplicate tiles introduced by the feature split; they are fully
        # masked in-kernel (their unclamped column offset is >= Dr).
        return (i, jnp.minimum(s * nc + j, nct - 1))

    total_steps = ns * nr * nc
    if tb * td * itemsize < (512 * 1024) and total_steps >= 4 and hasattr(pl, "Buffered"):
        # Small blocks: deepen prefetch so the fixed per-step DMA latency stays hidden.
        in_spec = pl.BlockSpec((tb, td), in_index_map, pipeline_mode=pl.Buffered(3))
    else:
        in_spec = pl.BlockSpec((tb, td), in_index_map)

    out_rows = ns * nr * tb
    out_spec = pl.BlockSpec((tb, _LANE), lambda s, i, j: (s * nr + i, 0))

    counts = pl.pallas_call(
        kernel,
        out_shape=jax.ShapeDtypeStruct((out_rows, _LANE), jnp.float32),
        grid_spec=pltpu.PrefetchScalarGridSpec(
            num_scalar_prefetch=0,
            grid=(ns, nr, nc),
            in_specs=[in_spec],
            out_specs=out_spec,
            scratch_shapes=[pltpu.VMEM((tb, _LANE), jnp.float32)],
        ),
        compiler_params=pltpu.CompilerParams(
            dimension_semantics=("parallel", "parallel", "arbitrary"),
        ),
        cost_estimate=pl.CostEstimate(
            flops=5 * R * Dr,
            transcendentals=0,
            bytes_accessed=R * Dr * itemsize + out_rows * _LANE * 4,
        ),
    )(xr)

    # lane + feature-split partials -> per-(folded-)row counts -> per-batch counts.
    per_row = counts.reshape(ns, nr * tb, _LANE).sum(axis=(0, 2))[:R]
    if fold > 1:
        per_row = per_row.reshape(B, fold).sum(axis=-1)
    # Note: counts are exact in f32 up to 2**24 violations per row (D < ~16.7M).
    log_px = jnp.where(per_row > 0,
                       per_row * jnp.float32(_MINUS_INFTY),
                       jnp.zeros_like(per_row))
    return log_px.astype(x.dtype)


class UniformDistribution:
    """JAX/Pallas port of contextflow UniformDistribution (forward = log_prob)."""

    def __init__(self, size, scale=1.0):
        self.size = tuple(size)
        self.scale = scale
        self.dim = 1
        for s in self.size:
            self.dim *= int(s)
        self.empty = jnp.zeros((1,), dtype=jnp.float32)  # analog of register_buffer('empty')

    def __call__(self, x, context=None):
        return self.log_prob(x, context)

    def log_prob(self, x, context=None):
        return uniform_log_prob(x, self.size)

    def sample(self, key, n_samples, context=None):
        # TODO(synk): sampling is plain JAX RNG (matches torch.rand(...) / scale), not a kernel.
        x = jax.random.uniform(key, (n_samples, *self.size)) / self.scale
        log_px = jnp.zeros((n_samples,), dtype=x.dtype)
        return x, log_px


def _ref_log_prob(x):
    B = x.shape[0]
    return jnp.where((x >= 0) & (x <= 1.0),
                     jnp.zeros_like(x),
                     jnp.full_like(x, _MINUS_INFTY)).reshape(B, -1).sum(-1)


if __name__ == "__main__":
    key = jax.random.PRNGKey(0)

    # Main check: B=2, C=4, H=16, W=16 with values in [-0.5, 1.5].
    B, C, H, W = 2, 4, 16, 16
    x = jax.random.uniform(key, (B, C, H, W), dtype=jnp.float32,
                           minval=-0.5, maxval=1.5)
    dist = UniformDistribution(size=(C, H, W))
    log_px = jax.block_until_ready(dist(x))
    ref = _ref_log_prob(x)
    assert log_px.shape == (B,)
    assert log_px.dtype == x.dtype
    assert jnp.allclose(log_px, ref), (log_px, ref)

    # Secondary check: tiny batch + ragged feature dim (full-extent block path).
    key2 = jax.random.PRNGKey(1)
    x2 = jax.random.uniform(key2, (3, 5, 50), dtype=jnp.float32,
                            minval=-0.2, maxval=1.2)
    dist2 = UniformDistribution(size=(5, 50))
    log_px2 = jax.block_until_ready(dist2(x2))
    assert jnp.allclose(log_px2, _ref_log_prob(x2)), (log_px2, _ref_log_prob(x2))

    print("KERNEL_OK")
</pallas_src>

<mosaic_0001>
module attributes {stable_mosaic.version = 11 : i64} {
  func.func @_uniform_count_kernel(%arg0: i32, %arg1: i32, %arg2: i32, %arg3: memref<8x128xf32, #tpu.memory_space<vmem>>, %arg4: memref<8x128xf32, #tpu.memory_space<vmem>>, %arg5: memref<8x128xf32, #tpu.memory_space<vmem>>) attributes {dimension_semantics = [#tpu.dimension_semantics<parallel>, #tpu.dimension_semantics<parallel>, #tpu.dimension_semantics<arbitrary>], iteration_bounds = array<i64: 1, 2, 1>, scalar_prefetch = 0 : i64, scratch_operands = 1 : i64, tpu.core_type = #tpu.core_type<tc>, window_params = [{transform_indices = @transform_0, window_bounds = array<i64: 8, 128>}, {transform_indices = @transform_1, window_bounds = array<i64: 8, 128>}]} {
    %c0_i32 = arith.constant 0 : i32
    %0 = arith.cmpi eq, %arg2, %c0_i32 : i32
    %1 = arith.extui %0 : i1 to i32
    %c0_i32_0 = arith.constant 0 : i32
    %2 = arith.cmpi ne, %1, %c0_i32_0 : i32
    scf.if %2 {
      %cst_11 = arith.constant 0.000000e+00 : f32
      %18 = vector.broadcast %cst_11 : f32 to vector<8x128xf32>
      %c0_12 = arith.constant 0 : index
      %c0_13 = arith.constant 0 : index
      %19 = vector.load %arg5[%c0_12, %c0_13] : memref<8x128xf32, #tpu.memory_space<vmem>>, vector<8x128xf32>
      tpu.vector_store %arg5[%c0_12, %c0_13], %18 {strides = array<i32>} : memref<8x128xf32, #tpu.memory_space<vmem>>, vector<8x128xf32>,
    } else {
    }
    %c0 = arith.constant 0 : index
    %c0_1 = arith.constant 0 : index
    %3 = vector.load %arg3[%c0, %c0_1] : memref<8x128xf32, #tpu.memory_space<vmem>>, vector<8x128xf32>
    %cst = arith.constant 0.000000e+00 : f32
    %4 = vector.broadcast %cst : f32 to vector<8x128xf32>
    %5 = arith.cmpf oge, %3, %4 : vector<8x128xf32>
    %cst_2 = arith.constant 1.000000e+00 : f32
    %6 = vector.broadcast %cst_2 : f32 to vector<8x128xf32>
    %7 = arith.cmpf ole, %3, %6 : vector<8x128xf32>
    %8 = arith.andi %5, %7 : vector<8x128xi1>
    %cst_3 = arith.constant 0.000000e+00 : f32
    %cst_4 = arith.constant 1.000000e+00 : f32
    %9 = vector.broadcast %cst_3 : f32 to vector<8x128xf32>
    %10 = vector.broadcast %cst_4 : f32 to vector<8x128xf32>
    %11 = arith.select %8, %9, %10 : vector<8x128xi1>, vector<8x128xf32>
    %c0_5 = arith.constant 0 : index
    %c0_6 = arith.constant 0 : index
    %12 = vector.load %arg5[%c0_5, %c0_6] : memref<8x128xf32, #tpu.memory_space<vmem>>, vector<8x128xf32>
    %13 = arith.addf %12, %11 : vector<8x128xf32>
    %c0_7 = arith.constant 0 : index
    %c0_8 = arith.constant 0 : index
    %14 = vector.load %arg5[%c0_7, %c0_8] : memref<8x128xf32, #tpu.memory_space<vmem>>, vector<8x128xf32>
    tpu.vector_store %arg5[%c0_7, %c0_8], %13 {strides = array<i32>} : memref<8x128xf32, #tpu.memory_space<vmem>>, vector<8x128xf32>,
    %c0_i32_9 = arith.constant 0 : i32
    %15 = arith.cmpi eq, %arg2, %c0_i32_9 : i32
    %16 = arith.extui %15 : i1 to i32
    %c0_i32_10 = arith.constant 0 : i32
    %17 = arith.cmpi ne, %16, %c0_i32_10 : i32
    scf.if %17 {
      %c0_11 = arith.constant 0 : index
      %c0_12 = arith.constant 0 : index
      %18 = vector.load %arg5[%c0_11, %c0_12] : memref<8x128xf32, #tpu.memory_space<vmem>>, vector<8x128xf32>
      %c0_13 = arith.constant 0 : index
      %c0_14 = arith.constant 0 : index
      %19 = vector.load %arg4[%c0_13, %c0_14] : memref<8x128xf32, #tpu.memory_space<vmem>>, vector<8x128xf32>
      tpu.vector_store %arg4[%c0_13, %c0_14], %18 {strides = array<i32>} : memref<8x128xf32, #tpu.memory_space<vmem>>, vector<8x128xf32>,
    } else {
    }
    return
  }
  func.func @transform_0(%arg0: i32, %arg1: i32, %arg2: i32) -> (i32, i32) {
    %c1_i32 = arith.constant 1 : i32
    %0 = arith.muli %arg0, %c1_i32 : i32
    %1 = arith.addi %0, %arg2 : i32
    %c0_i32 = arith.constant 0 : i32
    %2 = arith.minsi %1, %c0_i32 : i32
    %c0_i32_0 = arith.constant 0 : i32
    return %arg1, %2 : i32, i32
  }
  func.func @transform_1(%arg0: i32, %arg1: i32, %arg2: i32) -> (i32, i32) {
    %c2_i32 = arith.constant 2 : i32
    %0 = arith.muli %arg0, %c2_i32 : i32
    %1 = arith.addi %0, %arg1 : i32
    %c0_i32 = arith.constant 0 : i32
    %c0_i32_0 = arith.constant 0 : i32
    return %1, %c0_i32 : i32, i32
  }
}

</mosaic_0001>

<llo_original>
// kernel: tpu_custom_call.1
$region0: #{tpu_custom_call.1}
  #allocation0 [shape = 'u32[]', space=smem, size = 0x4, offset = 0x4, fixed_abs, tag = 'smem constant byte address 0x4 - core index']
  #allocation1 [shape = 'u32[144,128]{1,0:T(1,128)}', space=vmem, size = 0x12000, scoped, tag = 'internal scratch']
  #allocation2 [shape = 'f32[8,128]{1,0:T(8,128)}', space=vmem, size = 0x1000, scoped, tag = 'scratch operand']
  %s0 = inlined_call_operand.hbm [shape: f32[16,128], index: 0, kind: input, shape index: {}]
  %s1 = inlined_call_operand.hbm [shape: f32[16,128], index: 1, kind: output, shape index: {}]
  %s2 = sld [smem:[#allocation0]]
  $region49: #{tpu_custom_call.1} parent=0
    _
  %s4 = ssub.s32 1, %s2
  %s5 = scalar_select 0, %s4, %s2
  $region1: #{tpu_custom_call.1} parent=0
    #allocation3 [shape = 'u8[8192]{0}', space=vmem, size = 0x2000, scoped, tag = 'input window, operand 0']
    #allocation4 [shape = 's32[2]{0}', space=sflag, size = 0x8, scoped, tag = 'scoped memory for tpu_custom_call.1']
    #allocation5 [shape = 's32[2]{0}', space=sflag, size = 0x8, scoped, tag = 'scoped memory for tpu_custom_call.1']
    #allocation6 [shape = 'u8[8192]{0}', space=vmem, size = 0x2000, scoped, tag = 'output window, operand 0']
    %6 = vsyncpa [#allocation4], 0
    %s7 = scalar_lea.sflag [#allocation4], 1
    %8 = vsyncpa %s7, 0
    %9 = vsyncpa [#allocation5], 0
    %s10 = scalar_lea.sflag [#allocation5], 1
    %11 = vsyncpa %s10, 0
    loop: start=0, step=1, limit=4
    $region2: #{tpu_custom_call.1} parent=1 // loop_pre_header
      _
    $region3: #{tpu_custom_call.1} parent=1 // loop_header
      %s13 = sphi 0, %s17
      %p14 = scmp.ge.s32.totalorder %s13, 4
      %s20 = sphi 0, %s39
      %s21 = sphi 0, %s35
      %s22 = sphi 0, %s31
      %s23 = sphi 0, %s20
      %s24 = sphi 0, %s21
      %s25 = sphi 0, %s22
      %s26 = sphi 0, %s23
      %s27 = sphi 0, %s24
      %s28 = sphi 0, %s25
      %s50 = sphi 0, %s52
      %s53 = sphi 0, %s50
      %s54 = sphi 0, %s53
      %s70 = sphi 0, %s54
      %s80 = sphi 0, %s82
      %s83 = sphi 0, %s80
      %s84 = sphi 0, %s83
      %s100 = sphi 0, %s84
    $region4: #{tpu_custom_call.1} parent=1 // loop_header_branch
      %16 = sbr.rel (%p14) target = $region8
    $region5: #{tpu_custom_call.1} parent=1 // loop_body
      %s18 = ssub.s32 %s13, 1
      %s19 = ssub.s32 %s13, 2
      %s29 = sadd.s32 1, %s22
      %p30 = scmp.ge.s32.totalorder %s29, 1
      %s31 = scalar_select %p30, 0, %s29
      %s32 = sadd.s32 1, %s21
      %s33 = scalar_select %p30, %s32, %s21
      %p34 = scmp.ge.s32.totalorder %s33, 2
      %s35 = scalar_select %p34, 0, %s33
      %s36 = sadd.s32 1, %s20
      %s37 = scalar_select %p34, %s36, %s20
      %p38 = scmp.ge.s32.totalorder %s37, 1
      %s39 = scalar_select %p38, 0, %s37
      %s40 = sadd.s32 %s20, %s22
      %p41 = scmp.lt.s32.totalorder %s40, 0
      %s42 = scalar_select %p41, %s40, 0
      %s43 = sadd.s32 %s39, %s31
      %p44 = scmp.lt.s32.totalorder %s43, 0
      %s45 = scalar_select %p44, %s43, 0
      %s46 = ssub.s32 %s21, %s35
      %s47 = ssub.s32 %s42, %s45
      %s48 = sor.u32 %s46, %s47
      %p49 = scmp.eq.s32.totalorder %s48, 0
      %s51 = sadd.s32 %s50, 1
      %s52 = scalar_select %p49, %s50, %s51
      %p55 = pneg %p49
      %p56 = scmp.eq.s32.totalorder %s13, 1
      %p57 = por %p55, %p56
      %p58 = scmp.ne.s32.totalorder %s50, %s53
      %p59 = scmp.eq.s32.totalorder %s13, 0
      %p60 = por %p58, %p59
      %p61 = scmp.ne.s32.totalorder %s50, %s53
      %p62 = scmp.eq.s32.totalorder %s18, 1
      %p63 = por %p61, %p62
      %p64 = scmp.ne.s32.totalorder %s53, %s54
      %p65 = scmp.eq.s32.totalorder %s18, 0
      %p66 = por %p64, %p65
      %p67 = scmp.ne.s32.totalorder %s53, %s54
      %p68 = scmp.eq.s32.totalorder %s19, 1
      %p69 = por %p67, %p68
      %p71 = scmp.ne.s32.totalorder %s54, %s70
      %p72 = scmp.eq.s32.totalorder %s19, 0
      %p73 = por %p71, %p72
      %s74 = smul.u32 %s20, 2
      %s75 = sadd.s32 %s74, %s21
      %s76 = smul.u32 %s39, 2
      %s77 = sadd.s32 %s76, %s35
      %s78 = ssub.s32 %s75, %s77
      %p79 = scmp.eq.s32.totalorder %s78, 0
      %s81 = sadd.s32 %s80, 1
      %s82 = scalar_select %p79, %s80, %s81
      %p85 = pneg %p79
      %p86 = scmp.eq.s32.totalorder %s13, 1
      %p87 = por %p85, %p86
      %p88 = scmp.ne.s32.totalorder %s80, %s83
      %p89 = scmp.eq.s32.totalorder %s13, 0
      %p90 = por %p88, %p89
      %p91 = scmp.ne.s32.totalorder %s80, %s83
      %p92 = scmp.eq.s32.totalorder %s18, 1
      %p93 = por %p91, %p92
      %p94 = scmp.ne.s32.totalorder %s83, %s84
      %p95 = scmp.eq.s32.totalorder %s18, 0
      %p96 = por %p94, %p95
      %p97 = scmp.ne.s32.totalorder %s83, %s84
      %p98 = scmp.eq.s32.totalorder %s19, 1
      %p99 = por %p97, %p98
      %p101 = scmp.ne.s32.totalorder %s84, %s100
      %p102 = scmp.eq.s32.totalorder %s19, 0
      %p103 = por %p101, %p102
      %p104 = scmp.le.s32.totalorder 1, %s13
      %p105 = scmp.lt.s32.totalorder %s13, 3
      %p106 = pnand %p104, %p105
      %p107 = pneg %p106
      // Predicated region
      $region9: #{tpu_custom_call.1} parent=5 // pred_check
        _
      $region10: #{tpu_custom_call.1} parent=5 // pred_check_branch
        %109 = sbr.rel (%p106) target = $region12
      $region11: #{tpu_custom_call.1} parent=5 // pred_region
        %s110 = ssub.s32 %s13, 1
      $region12: #{tpu_custom_call.1} parent=5 // pred_fallthru
        _
      %p111 = scmp.lt.s32.totalorder %s13, 2
      // Predicated region
      $region13: #{tpu_custom_call.1} parent=5 // pred_check
        %p112 = pneg %p111
      $region14: #{tpu_custom_call.1} parent=5 // pred_check_branch
        %114 = sbr.rel (%p112) target = $region16
      $region15: #{tpu_custom_call.1} parent=5 // pred_region
        // Predicated region
        $region17: #{tpu_custom_call.1} parent=15 // pred_check
          %p115 = pneg %p60
        $region18: #{tpu_custom_call.1} parent=15 // pred_check_branch
          %117 = sbr.rel (%p115) target = $region20
        $region19: #{tpu_custom_call.1} parent=15 // pred_region
          %s118 = sand.u32 %s50, 1
          %s119 = scalar_lea.sflag [#allocation4], %s118
          %s120 = sand.u32 %s50, 1
          %s121 = smul.addr %s120, 8
          %s122 = scalar_lea.vmem [#allocation3], %s121
          %s123 = sadd.s32 %s20, %s22
          %p124 = scmp.lt.s32.totalorder %s123, 0
          %s125 = scalar_select %p124, %s123, 0
          %s127 = ssub.s32 128, 128
          %128 = vsyncadd %s119, %s127
          %s129 = sadd.s32 %s125, %s21
          %s130 = smul.addr %s129, 128
          %s131 = scalar_lea.hbm %s0, %s130
          %s133 = sshll.u32 %s122, 4
          %s134 = int_to_ptr.vmem [resolvable:$true] %s133
          %136 = dma.hbm_to_vmem [thread:$0]  %s131, 128, %s134, %s119
        $region20: #{tpu_custom_call.1} parent=15 // pred_fallthru
          _
      $region16: #{tpu_custom_call.1} parent=5 // pred_fallthru
        _
      %p137 = scmp.le.s32.totalorder 1, %s13
      %p138 = scmp.lt.s32.totalorder %s13, 3
      %p139 = pnand %p137, %p138
      %p140 = pneg %p139
      // Predicated region
      $region21: #{tpu_custom_call.1} parent=5 // pred_check
        _
      $region22: #{tpu_custom_call.1} parent=5 // pred_check_branch
        %142 = sbr.rel (%p139) target = $region24
      $region23: #{tpu_custom_call.1} parent=5 // pred_region
        %s143 = ssub.s32 %s13, 1
        %s144 = sand.u32 %s53, 1
        %s145 = scalar_lea.sflag [#allocation4], %s144
        %s146 = sand.u32 %s53, 1
        %s147 = smul.addr %s146, 8
        %s148 = scalar_lea.vmem [#allocation3], %s147
        // Predicated region
        $region25: #{tpu_custom_call.1} parent=23 // pred_check
          %p149 = pneg %p66
        $region26: #{tpu_custom_call.1} parent=23 // pred_check_branch
          %151 = sbr.rel (%p149) target = $region28
        $region27: #{tpu_custom_call.1} parent=23 // pred_region
          %152 = dma.done %s145, 128
        $region28: #{tpu_custom_call.1} parent=23 // pred_fallthru
          _
        %s153 = sand.u32 %s53, 1
        %s154 = scalar_lea.sflag [#allocation4], %s153
        %s155 = sand.u32 %s53, 1
        %s156 = smul.addr %s155, 8
        %s157 = scalar_lea.vmem [#allocation3], %s156
        %p158 = pneg %p66
        %p159 = pneg %p63
        %p160 = pneg %p96
        %p161 = pneg %p93
        %s162 = sand.u32 %s83, 1
        %s163 = scalar_lea.sflag [#allocation5], %s162
        %s164 = sand.u32 %s83, 1
        %s165 = smul.addr %s164, 8
        %s166 = scalar_lea.vmem [#allocation6], %s165
        %s167 = sadd.s32 %s23, %s25
        %p168 = scmp.lt.s32.totalorder %s167, 0
        %s169 = scalar_select %p168, %s167, 0
        %s170 = smul.u32 %s23, 2
        %s171 = sadd.s32 %s170, %s24
        %p172 = scmp.eq.s32.totalorder %s25, 0
        // Predicated region
        $region29: #{tpu_custom_call.1} parent=23 // pred_check
          %p173 = pneg %p172
        $region30: #{tpu_custom_call.1} parent=23 // pred_check_branch
          %175 = sbr.rel (%p173) target = $region32
        $region31: #{tpu_custom_call.1} parent=23 // pred_region
          %176 = vst [vmem:[#allocation2] sm:$0xff] 0.0
        $region32: #{tpu_custom_call.1} parent=23 // pred_fallthru
          _
        %v177 = vld [vmem:[%s148] sm:$0xff]
        %vm178 = vcmp.ge.f32.partialorder %v177, 0.0
        %vm179 = vcmp.le.f32.partialorder %v177, 1.0
        %vm180 = vmand %vm178, %vm179
        %v181 = vsel %vm180, 0.0, 1.0
        %v182 = vld [vmem:[#allocation2] sm:$0xff]
        %v183 = vadd.f32 %v182, %v181
        %184 = vst [vmem:[#allocation2] sm:$0xff] %v183
        // Predicated region
        $region33: #{tpu_custom_call.1} parent=23 // pred_check
          %p185 = pneg %p172
        $region34: #{tpu_custom_call.1} parent=23 // pred_check_branch
          %187 = sbr.rel (%p185) target = $region36
        $region35: #{tpu_custom_call.1} parent=23 // pred_region
          %v188 = vld [vmem:[#allocation2] sm:$0xff]
          %189 = vst [vmem:[%s166] sm:$0xff] %v188
        $region36: #{tpu_custom_call.1} parent=23 // pred_fallthru
          _
        %s190 = sand.u32 %s83, 1
        %s191 = scalar_lea.sflag [#allocation5], %s190
        %s192 = sand.u32 %s83, 1
        %s193 = smul.addr %s192, 8
        %s194 = scalar_lea.vmem [#allocation6], %s193
        // Predicated region
        $region37: #{tpu_custom_call.1} parent=23 // pred_check
          %p195 = pneg %p93
        $region38: #{tpu_custom_call.1} parent=23 // pred_check_branch
          %197 = sbr.rel (%p195) target = $region40
        $region39: #{tpu_custom_call.1} parent=23 // pred_region
          %s198 = smul.u32 %s23, 2
          %s199 = sadd.s32 %s198, %s24
          %s201 = ssub.s32 128, 128
          %202 = vsyncadd %s191, %s201
          %s203 = smul.addr %s199, 128
          %s204 = scalar_lea.hbm %s1, %s203
          %s206 = sshll.u32 %s194, 4
          %s207 = int_to_ptr.vmem [resolvable:$true] %s206
          %209 = dma.vmem_to_hbm [thread:$0]  %s207, 128, %s204, %s191
        $region40: #{tpu_custom_call.1} parent=23 // pred_fallthru
          _
      $region24: #{tpu_custom_call.1} parent=5 // pred_fallthru
        _
      %p210 = scmp.le.s32.totalorder 2, %s13
      // Predicated region
      $region41: #{tpu_custom_call.1} parent=5 // pred_check
        %p211 = pneg %p210
      $region42: #{tpu_custom_call.1} parent=5 // pred_check_branch
        %213 = sbr.rel (%p211) target = $region44
      $region43: #{tpu_custom_call.1} parent=5 // pred_region
        %s214 = ssub.s32 %s13, 2
        // Predicated region
        $region45: #{tpu_custom_call.1} parent=43 // pred_check
          %p215 = pneg %p99
        $region46: #{tpu_custom_call.1} parent=43 // pred_check_branch
          %217 = sbr.rel (%p215) target = $region48
        $region47: #{tpu_custom_call.1} parent=43 // pred_region
          %s218 = sand.u32 %s84, 1
          %s219 = scalar_lea.sflag [#allocation5], %s218
          %s220 = sand.u32 %s84, 1
          %s221 = smul.addr %s220, 8
          %s222 = scalar_lea.vmem [#allocation6], %s221
          %223 = dma.done %s219, 128
        $region48: #{tpu_custom_call.1} parent=43 // pred_fallthru
          _
      $region44: #{tpu_custom_call.1} parent=5 // pred_fallthru
        _
    $region6: #{tpu_custom_call.1} parent=1 // loop_footer
      %s17 = sadd.s32 1, %s13
    $region7: #{tpu_custom_call.1} parent=1 // loop_footer_branch
      %12 = sbr.rel target = $region3
    $region8: #{tpu_custom_call.1} parent=1 // loop_exit
      _
    %224 = vsyncpa [#allocation4], 1
    %s225 = scalar_lea.sflag [#allocation4], 1
    %226 = vsyncpa %s225, 1
    %227 = vsyncpa [#allocation5], 1
    %s228 = scalar_lea.sflag [#allocation5], 1
    %229 = vsyncpa %s228, 1

</llo_original>
